<compile_context>
chip_gen: v5e
topology: v5e:2x2
jax: 0.10.0
libtpu: 0.0.40
codegen_flags: <defaults>
</compile_context>

<pallas_src>
import numpy as np
import jax
import jax.numpy as jnp
from jax.experimental import pallas as pl
from jax.experimental.pallas import tpu as pltpu

NODE_TILE = 256                      # multiple of 128 (v5e MXU) and 256 (v6e/v7x MXU)
LANE = 128
# Explicit scoped-VMEM limit: comfortably above what the tiles below need, and
# well under v7x's 64 MiB physical VMEM (leave headroom for double-buffering).
_VMEM_LIMIT = 32 * 1024 * 1024


def _selu(v):
    # torch.nn.SELU constants; clamp the exp argument so the unselected branch
    # of the where never produces inf.
    alpha = jnp.float32(1.6732632423543772)
    scale = jnp.float32(1.0507009873554805)
    return scale * jnp.where(v > 0, v, alpha * (jnp.exp(jnp.minimum(v, 0.0)) - 1.0))


# ---------------- kernel 1: per-node projection + attention logits -----------
def gat_proj_kernel(h_ref, w_ref, a_ref, feat_ref, score_ref):
    f32 = jnp.float32
    hb = h_ref[...].astype(jnp.bfloat16)
    wb = w_ref[...].astype(jnp.bfloat16)
    feat = jnp.dot(hb, wb, preferred_element_type=f32)            # (T, Hp)   MXU
    feat_ref[...] = feat
    # col 0 = el = feat . attn_l ; col 1 = er = feat . attn_r  (lane-dense, MXU)
    score_ref[...] = jnp.dot(feat.astype(jnp.bfloat16),
                             a_ref[...].astype(jnp.bfloat16),
                             preferred_element_type=f32)          # (T, 128)


# ---------------- kernel 2: masked edge-softmax + aggregation + bias + SELU --
def gat_attn_kernel(adj_ref, er_ref, el_ref, feat_ref, b_ref, out_ref):
    f32 = jnp.float32
    mask = adj_ref[...].astype(f32) > 0.0                         # (T, N) from int8
    e = er_ref[...] + el_ref[...]                                 # (T,1)+(1,N) -> (T,N)
    e = jnp.where(e > 0, e, f32(0.2) * e)                         # leaky_relu(0.2)
    e = jnp.where(mask, e, f32(-1e30))
    e_max = jnp.max(e, axis=-1, keepdims=True)
    ex = jnp.where(mask, jnp.exp(e - e_max), f32(0.0))
    denom = jnp.maximum(jnp.sum(ex, axis=-1, keepdims=True), f32(1e-30))
    inv = pl.reciprocal(denom, approx=True)                       # EUP slot (~free)
    agg = jnp.dot(ex.astype(jnp.bfloat16),
                  feat_ref[...].astype(jnp.bfloat16),
                  preferred_element_type=f32)                     # (T, Hp)   MXU
    out_ref[...] = _selu(agg * inv + b_ref[...])                  # normalize post-matmul


# ---------------- kernel 3: mean_nodes + fc1 + SELU + fc2 + log_softmax ------
def readout_kernel(pool_ref, h_ref, w1_ref, b1_ref, w2_ref, b2_ref, cmask_ref, out_ref):
    f32 = jnp.float32
    hg = jnp.dot(pool_ref[...], h_ref[...], preferred_element_type=f32)   # (Gp, Hp)
    z = _selu(jnp.dot(hg, w1_ref[...], preferred_element_type=f32) + b1_ref[...])
    z = jnp.dot(z, w2_ref[...], preferred_element_type=f32) + b2_ref[...]
    valid = cmask_ref[...] > 0                                    # (1, Cp) real classes
    z = jnp.where(valid, z, f32(-1e30))
    z_max = jnp.max(z, axis=-1, keepdims=True)
    zs = z - z_max
    lse = jnp.log(jnp.sum(jnp.where(valid, jnp.exp(zs), f32(0.0)),
                          axis=-1, keepdims=True))
    out_ref[...] = zs - lse


# ------------------------------ pallas_call wrappers --------------------------
def _gat_project(h, w, a):
    n_pad, f_pad = h.shape
    h_pad = w.shape[1]
    grid = (n_pad // NODE_TILE,)
    return pl.pallas_call(
        gat_proj_kernel,
        out_shape=(jax.ShapeDtypeStruct((n_pad, h_pad), jnp.float32),
                   jax.ShapeDtypeStruct((n_pad, LANE), jnp.float32)),
        grid=grid,
        in_specs=[pl.BlockSpec((NODE_TILE, f_pad), lambda i: (i, 0)),
                  pl.BlockSpec((f_pad, h_pad), lambda i: (0, 0)),
                  pl.BlockSpec((h_pad, LANE), lambda i: (0, 0))],
        out_specs=(pl.BlockSpec((NODE_TILE, h_pad), lambda i: (i, 0)),
                   pl.BlockSpec((NODE_TILE, LANE), lambda i: (i, 0))),
        compiler_params=pltpu.CompilerParams(
            dimension_semantics=("parallel",),
            vmem_limit_bytes=_VMEM_LIMIT),
        cost_estimate=pl.CostEstimate(
            flops=2 * n_pad * f_pad * h_pad + 2 * n_pad * h_pad * LANE,
            transcendentals=0,
            bytes_accessed=4 * (n_pad * f_pad + f_pad * h_pad + h_pad * LANE
                                + n_pad * h_pad + n_pad * LANE)),
    )(h, w, a)


def _gat_aggregate(adj, er, el, feat, b):
    n_pad = adj.shape[0]
    h_pad = feat.shape[1]
    grid = (n_pad // NODE_TILE,)
    return pl.pallas_call(
        gat_attn_kernel,
        out_shape=jax.ShapeDtypeStruct((n_pad, h_pad), jnp.float32),
        grid=grid,
        in_specs=[pl.BlockSpec((NODE_TILE, n_pad), lambda i: (i, 0)),   # adj dst rows (int8)
                  pl.BlockSpec((NODE_TILE, 1), lambda i: (i, 0)),       # er (dst)
                  pl.BlockSpec((1, n_pad), lambda i: (0, 0)),           # el (all src)
                  pl.BlockSpec((n_pad, h_pad), lambda i: (0, 0)),       # feat (resident)
                  pl.BlockSpec((1, h_pad), lambda i: (0, 0))],          # bias
        out_specs=pl.BlockSpec((NODE_TILE, h_pad), lambda i: (i, 0)),
        compiler_params=pltpu.CompilerParams(
            dimension_semantics=("parallel",),
            vmem_limit_bytes=_VMEM_LIMIT),
        cost_estimate=pl.CostEstimate(
            flops=2 * n_pad * n_pad * h_pad,
            transcendentals=n_pad * n_pad,
            bytes_accessed=n_pad * n_pad                     # int8 adjacency
                           + 4 * (2 * n_pad * h_pad + 2 * n_pad + h_pad)),
    )(adj, er, el, feat, b)


def _readout(pool, h, w1, b1, w2, b2, cmask):
    g_pad = pool.shape[0]
    c_pad = w2.shape[1]
    vmem = pl.BlockSpec(memory_space=pltpu.MemorySpace.VMEM)
    return pl.pallas_call(
        readout_kernel,
        out_shape=jax.ShapeDtypeStruct((g_pad, c_pad), jnp.float32),
        in_specs=[vmem] * 7,
        out_specs=vmem,
        compiler_params=pltpu.CompilerParams(vmem_limit_bytes=_VMEM_LIMIT),
    )(pool, h, w1, b1, w2, b2, cmask)


# ----------------------------------- forward ----------------------------------
def _attn_mat(al, ar, h_pad):
    """(h_pad, 128) matrix whose col 0 / col 1 give el / er via one MXU matmul."""
    h = al.shape[1]
    a = jnp.zeros((h_pad, LANE), jnp.float32)
    a = a.at[:h, 0].set(al[0])
    a = a.at[:h, 1].set(ar[0])
    return a


def gcnfn_forward(x, adj_i8, pool, params, n_classes):
    n, f = x.shape
    g = pool.shape[0]
    h_dim = params["w1"].shape[1]
    f1_dim = params["fc1_w"].shape[1]

    n_pad = -(-n // NODE_TILE) * NODE_TILE
    f_pad = -(-f // LANE) * LANE
    h_pad = -(-h_dim // LANE) * LANE
    f1_pad = -(-f1_dim // LANE) * LANE
    c_pad = LANE
    g_pad = -(-g // 8) * 8

    f32 = jnp.float32
    pad2 = lambda a, r, c: jnp.pad(a, ((0, r - a.shape[0]), (0, c - a.shape[1])))

    xp = pad2(x.astype(f32), n_pad, f_pad)
    adjp = pad2(adj_i8, n_pad, n_pad)                      # stays int8
    poolp = pad2(pool.astype(f32), g_pad, n_pad)

    w1 = pad2(params["w1"], f_pad, h_pad)
    w2 = pad2(params["w2"], h_pad, h_pad)
    b1 = pad2(params["b1"], 1, h_pad)
    b2 = pad2(params["b2"], 1, h_pad)
    a1 = _attn_mat(params["al1"], params["ar1"], h_pad)
    a2 = _attn_mat(params["al2"], params["ar2"], h_pad)
    fc1w = pad2(params["fc1_w"], h_pad, f1_pad)
    fc1b = pad2(params["fc1_b"], 1, f1_pad)
    fc2w = pad2(params["fc2_w"], f1_pad, c_pad)
    fc2b = pad2(params["fc2_b"], 1, c_pad)
    cmask = (jnp.arange(c_pad) < n_classes).astype(f32).reshape(1, c_pad)

    h = xp
    for (w, a, b) in ((w1, a1, b1), (w2, a2, b2)):
        feat, scores = _gat_project(h, w, a)
        el_row = scores[:, 0].reshape(1, n_pad)            # free layout reshuffle in XLA
        er_col = scores[:, 1].reshape(n_pad, 1)
        h = _gat_aggregate(adjp, er_col, el_row, feat, b)

    out = _readout(poolp, h, fc1w, fc1b, fc2w, fc2b, cmask)
    return out[:g, :n_classes]


# ------------------------------------ setup ------------------------------------
def init_params(key, in_channels, n_hidden, n_classes):
    ks = jax.random.split(key, 10)
    s = lambda fan_in: 1.0 / jnp.sqrt(jnp.float32(fan_in))
    return {
        # GATConv 1 (num_heads=1)
        "w1":  jax.random.normal(ks[0], (in_channels, n_hidden), jnp.float32) * s(in_channels),
        "al1": jax.random.normal(ks[1], (1, n_hidden), jnp.float32) * 0.1,
        "ar1": jax.random.normal(ks[2], (1, n_hidden), jnp.float32) * 0.1,
        "b1":  jnp.zeros((1, n_hidden), jnp.float32),
        # GATConv 2
        "w2":  jax.random.normal(ks[3], (n_hidden, n_hidden), jnp.float32) * s(n_hidden),
        "al2": jax.random.normal(ks[4], (1, n_hidden), jnp.float32) * 0.1,
        "ar2": jax.random.normal(ks[5], (1, n_hidden), jnp.float32) * 0.1,
        "b2":  jnp.zeros((1, n_hidden), jnp.float32),
        # fc1 / fc2
        "fc1_w": jax.random.normal(ks[6], (n_hidden, n_hidden // 2), jnp.float32) * s(n_hidden),
        "fc1_b": jax.random.normal(ks[7], (1, n_hidden // 2), jnp.float32) * s(n_hidden),
        "fc2_w": jax.random.normal(ks[8], (n_hidden // 2, n_classes), jnp.float32) * s(n_hidden // 2),
        "fc2_b": jax.random.normal(ks[9], (1, n_classes), jnp.float32) * s(n_hidden // 2),
    }


def build_batched_graph(n_graphs, nodes_per_graph):
    """Block-diagonal int8 adjacency (ring + self loops) and mean-pool matrix."""
    n = n_graphs * nodes_per_graph
    adj = np.zeros((n, n), np.int8)          # adj[dst, src]
    pool = np.zeros((n_graphs, n), np.float32)
    for gi in range(n_graphs):
        base = gi * nodes_per_graph
        for i in range(nodes_per_graph):
            u = base + i
            v = base + (i + 1) % nodes_per_graph
            adj[v, u] = 1                    # edge u -> v
            adj[u, v] = 1                    # edge v -> u (undirected ring)
            adj[u, u] = 1                    # self loop
        pool[gi, base:base + nodes_per_graph] = 1.0 / nodes_per_graph
    return jnp.asarray(adj), jnp.asarray(pool)


# ------------------------------------- main -------------------------------------
if __name__ == "__main__":
    in_channels = 16
    n_hidden = 64          # module default
    n_classes = 2
    n_graphs = 3
    nodes_per_graph = 96   # N = 288 -> padded to 512 -> 2 node tiles per grid axis

    key = jax.random.PRNGKey(0)
    kx, kp = jax.random.split(key)
    n_nodes = n_graphs * nodes_per_graph
    x = jax.random.normal(kx, (n_nodes, in_channels), jnp.float32)
    adj, pool = build_batched_graph(n_graphs, nodes_per_graph)
    params = init_params(kp, in_channels, n_hidden, n_classes)

    out = gcnfn_forward(x, adj, pool, params, n_classes)
    jax.block_until_ready(out)
    assert out.shape == (n_graphs, n_classes)
    assert bool(jnp.all(jnp.isfinite(out)))
    # log_softmax rows must exp-sum to ~1
    assert bool(jnp.all(jnp.abs(jnp.sum(jnp.exp(out), axis=1) - 1.0) < 1e-3))
    print("KERNEL_OK")
</pallas_src>

<mosaic_0001>
module attributes {stable_mosaic.version = 11 : i64} {
  func.func @gat_proj_kernel(%arg0: i32, %arg1: memref<256x128xf32, #tpu.memory_space<vmem>>, %arg2: memref<128x128xf32, #tpu.memory_space<vmem>>, %arg3: memref<128x128xf32, #tpu.memory_space<vmem>>, %arg4: memref<256x128xf32, #tpu.memory_space<vmem>>, %arg5: memref<256x128xf32, #tpu.memory_space<vmem>>) attributes {dimension_semantics = [#tpu.dimension_semantics<parallel>], iteration_bounds = array<i64: 2>, scalar_prefetch = 0 : i64, scratch_operands = 0 : i64, tpu.core_type = #tpu.core_type<tc>, window_params = [{transform_indices = @transform_0, window_bounds = array<i64: 256, 128>}, {pipeline_mode = #tpu.pipeline_mode<synchronous>, transform_indices = @transform_1, window_bounds = array<i64: 128, 128>}, {pipeline_mode = #tpu.pipeline_mode<synchronous>, transform_indices = @transform_2, window_bounds = array<i64: 128, 128>}, {transform_indices = @transform_3, window_bounds = array<i64: 256, 128>}, {transform_indices = @transform_4, window_bounds = array<i64: 256, 128>}]} {
    %c0 = arith.constant 0 : index
    %c0_0 = arith.constant 0 : index
    %0 = vector.load %arg1[%c0, %c0_0] : memref<256x128xf32, #tpu.memory_space<vmem>>, vector<256x128xf32>
    %1 = arith.truncf %0 : vector<256x128xf32> to vector<256x128xbf16>
    %c0_1 = arith.constant 0 : index
    %c0_2 = arith.constant 0 : index
    %2 = vector.load %arg2[%c0_1, %c0_2] : memref<128x128xf32, #tpu.memory_space<vmem>>, vector<128x128xf32>
    %3 = arith.truncf %2 : vector<128x128xf32> to vector<128x128xbf16>
    %cst = arith.constant dense<0.000000e+00> : vector<256x128xf32>
    %4 = tpu.matmul %1, %3, %cst {dimension_numbers = #tpu.dot_dimension_numbers<[1], [0], [0], [1], [0, 0, 1, 1], [], []>} : vector<256x128xbf16>, vector<128x128xbf16>, vector<256x128xf32> -> vector<256x128xf32>
    %c0_3 = arith.constant 0 : index
    %c0_4 = arith.constant 0 : index
    %5 = vector.load %arg4[%c0_3, %c0_4] : memref<256x128xf32, #tpu.memory_space<vmem>>, vector<256x128xf32>
    tpu.vector_store %arg4[%c0_3, %c0_4], %4 {strides = array<i32>} : memref<256x128xf32, #tpu.memory_space<vmem>>, vector<256x128xf32>,
    %6 = arith.truncf %4 : vector<256x128xf32> to vector<256x128xbf16>
    %c0_5 = arith.constant 0 : index
    %c0_6 = arith.constant 0 : index
    %7 = vector.load %arg3[%c0_5, %c0_6] : memref<128x128xf32, #tpu.memory_space<vmem>>, vector<128x128xf32>
    %8 = arith.truncf %7 : vector<128x128xf32> to vector<128x128xbf16>
    %cst_7 = arith.constant dense<0.000000e+00> : vector<256x128xf32>
    %9 = tpu.matmul %6, %8, %cst_7 {dimension_numbers = #tpu.dot_dimension_numbers<[1], [0], [0], [1], [0, 0, 1, 1], [], []>} : vector<256x128xbf16>, vector<128x128xbf16>, vector<256x128xf32> -> vector<256x128xf32>
    %c0_8 = arith.constant 0 : index
    %c0_9 = arith.constant 0 : index
    %10 = vector.load %arg5[%c0_8, %c0_9] : memref<256x128xf32, #tpu.memory_space<vmem>>, vector<256x128xf32>
    tpu.vector_store %arg5[%c0_8, %c0_9], %9 {strides = array<i32>} : memref<256x128xf32, #tpu.memory_space<vmem>>, vector<256x128xf32>,
    return
  }
  func.func @transform_0(%arg0: i32) -> (i32, i32) {
    %c0_i32 = arith.constant 0 : i32
    %c0_i32_0 = arith.constant 0 : i32
    return %arg0, %c0_i32 : i32, i32
  }
  func.func @transform_1(%arg0: i32) -> (i32, i32) {
    %c0_i32 = arith.constant 0 : i32
    %c0_i32_0 = arith.constant 0 : i32
    %c0_i32_1 = arith.constant 0 : i32
    return %c0_i32, %c0_i32_0 : i32, i32
  }
  func.func @transform_2(%arg0: i32) -> (i32, i32) {
    %c0_i32 = arith.constant 0 : i32
    %c0_i32_0 = arith.constant 0 : i32
    %c0_i32_1 = arith.constant 0 : i32
    return %c0_i32, %c0_i32_0 : i32, i32
  }
  func.func @transform_3(%arg0: i32) -> (i32, i32) {
    %c0_i32 = arith.constant 0 : i32
    %c0_i32_0 = arith.constant 0 : i32
    return %arg0, %c0_i32 : i32, i32
  }
  func.func @transform_4(%arg0: i32) -> (i32, i32) {
    %c0_i32 = arith.constant 0 : i32
    %c0_i32_0 = arith.constant 0 : i32
    return %arg0, %c0_i32 : i32, i32
  }
}

</mosaic_0001>

<llo_original>
// kernel: tpu_custom_call.1
$region0: #{tpu_custom_call.1}
  #allocation0 [shape = 'u32[]', space=smem, size = 0x4, offset = 0x4, fixed_abs, tag = 'smem constant byte address 0x4 - core index']
  #allocation1 [shape = 'u32[72,128]{1,0:T(1,128)}', space=vmem, size = 0x9000, scoped, tag = 'internal scratch']
  %s0 = inlined_call_operand.hbm [shape: f32[512,128], index: 0, kind: input, shape index: {}]
  %s1 = inlined_call_operand.hbm [shape: f32[128,128], index: 1, kind: input, shape index: {}]
  %s2 = inlined_call_operand.hbm [shape: f32[128,128], index: 2, kind: input, shape index: {}]
  %s3 = inlined_call_operand.hbm [shape: f32[512,128], index: 3, kind: output, shape index: {0}]
  %s4 = inlined_call_operand.hbm [shape: f32[512,128], index: 4, kind: output, shape index: {1}]
  %5 = xla_tuple %s3, %s4
  %s6 = sld [smem:[#allocation0]]
  $region65: #{tpu_custom_call.1} parent=0
    _
  %s8 = ssub.s32 1, %s6
  %s9 = scalar_select 0, %s8, %s6
  $region1: #{tpu_custom_call.1} parent=0
    #allocation2 [shape = 'u8[262144]{0}', space=vmem, size = 0x40000, scoped, tag = 'input window, operand 0']
    #allocation3 [shape = 's32[2]{0}', space=sflag, size = 0x8, scoped, tag = 'scoped memory for tpu_custom_call.1']
    #allocation4 [shape = 's32[2]{0}', space=sflag, size = 0x8, scoped, tag = 'scoped memory for tpu_custom_call.1']
    #allocation5 [shape = 'u8[65536]{0}', space=vmem, size = 0x10000, scoped, tag = 'input window, operand 1, single buffered']
    #allocation6 [shape = 's32[1]{0}', space=sflag, size = 0x4, scoped, tag = 'scoped memory for tpu_custom_call.1']
    #allocation7 [shape = 'u8[65536]{0}', space=vmem, size = 0x10000, scoped, tag = 'input window, operand 2, single buffered']
    #allocation8 [shape = 'u8[262144]{0}', space=vmem, size = 0x40000, scoped, tag = 'output window, operand 0']
    #allocation9 [shape = 'u8[262144]{0}', space=vmem, size = 0x40000, scoped, tag = 'output window, operand 1']
    #allocation10 [shape = 's32[2]{0}', space=sflag, size = 0x8, scoped, tag = 'scoped memory for tpu_custom_call.1']
    %10 = vsyncpa [#allocation3], 0
    %s11 = scalar_lea.sflag [#allocation3], 1
    %12 = vsyncpa %s11, 0
    %13 = vsyncpa [#allocation6], 0
    %14 = vsyncpa [#allocation4], 0
    %s15 = scalar_lea.sflag [#allocation4], 1
    %16 = vsyncpa %s15, 0
    %17 = vsyncpa [#allocation10], 0
    %s18 = scalar_lea.sflag [#allocation10], 1
    %19 = vsyncpa %s18, 0
    loop: start=0, step=1, limit=4
    $region2: #{tpu_custom_call.1} parent=1 // loop_pre_header
      _
    $region3: #{tpu_custom_call.1} parent=1 // loop_header
      %s21 = sphi 0, %s25
      %p22 = scmp.ge.s32.totalorder %s21, 4
      %s31 = sphi 0, %s33
      %s34 = sphi 0, %s31
      %s35 = sphi 0, %s34
      %s51 = sphi 0, %s35
      %s55 = sphi 0, %s55
      %s57 = sphi 0, %s55
      %s58 = sphi 0, %s57
      %s72 = sphi 0, %s58
      %s76 = sphi 0, %s76
      %s78 = sphi 0, %s76
      %s79 = sphi 0, %s78
      %s93 = sphi 0, %s79
      %s99 = sphi 0, %s101
      %s102 = sphi 0, %s99
      %s103 = sphi 0, %s102
      %s119 = sphi 0, %s103
      %s125 = sphi 0, %s127
      %s128 = sphi 0, %s125
      %s129 = sphi 0, %s128
      %s145 = sphi 0, %s129
    $region4: #{tpu_custom_call.1} parent=1 // loop_header_branch
      %24 = sbr.rel (%p22) target = $region8
    $region5: #{tpu_custom_call.1} parent=1 // loop_body
      %s26 = ssub.s32 %s21, 1
      %s27 = ssub.s32 %s21, 2
      %s28 = sadd.s32 %s21, 1
      %s29 = ssub.s32 %s21, %s28
      %p30 = scmp.eq.s32.totalorder %s29, 0
      %s32 = sadd.s32 %s31, 1
      %s33 = scalar_select %p30, %s31, %s32
      %p36 = pneg %p30
      %p37 = scmp.eq.s32.totalorder %s21, 1
      %p38 = por %p36, %p37
      %p39 = scmp.ne.s32.totalorder %s31, %s34
      %p40 = scmp.eq.s32.totalorder %s21, 0
      %p41 = por %p39, %p40
      %p42 = scmp.ne.s32.totalorder %s31, %s34
      %p43 = scmp.eq.s32.totalorder %s26, 1
      %p44 = por %p42, %p43
      %p45 = scmp.ne.s32.totalorder %s34, %s35
      %p46 = scmp.eq.s32.totalorder %s26, 0
      %p47 = por %p45, %p46
      %p48 = scmp.ne.s32.totalorder %s34, %s35
      %p49 = scmp.eq.s32.totalorder %s27, 1
      %p50 = por %p48, %p49
      %p52 = scmp.ne.s32.totalorder %s35, %s51
      %p53 = scmp.eq.s32.totalorder %s27, 0
      %p54 = por %p52, %p53
      %s56 = sadd.s32 %s55, 1
      %p59 = scmp.eq.s32.totalorder %s21, 1
      %p60 = scmp.ne.s32.totalorder %s55, %s57
      %p61 = scmp.eq.s32.totalorder %s21, 0
      %p62 = por %p60, %p61
      %p63 = scmp.ne.s32.totalorder %s55, %s57
      %p64 = scmp.eq.s32.totalorder %s26, 1
      %p65 = por %p63, %p64
      %p66 = scmp.ne.s32.totalorder %s57, %s58
      %p67 = scmp.eq.s32.totalorder %s26, 0
      %p68 = por %p66, %p67
      %p69 = scmp.ne.s32.totalorder %s57, %s58
      %p70 = scmp.eq.s32.totalorder %s27, 1
      %p71 = por %p69, %p70
      %p73 = scmp.ne.s32.totalorder %s58, %s72
      %p74 = scmp.eq.s32.totalorder %s27, 0
      %p75 = por %p73, %p74
      %s77 = sadd.s32 %s76, 1
      %p80 = scmp.eq.s32.totalorder %s21, 1
      %p81 = scmp.ne.s32.totalorder %s76, %s78
      %p82 = scmp.eq.s32.totalorder %s21, 0
      %p83 = por %p81, %p82
      %p84 = scmp.ne.s32.totalorder %s76, %s78
      %p85 = scmp.eq.s32.totalorder %s26, 1
      %p86 = por %p84, %p85
      %p87 = scmp.ne.s32.totalorder %s78, %s79
      %p88 = scmp.eq.s32.totalorder %s26, 0
      %p89 = por %p87, %p88
      %p90 = scmp.ne.s32.totalorder %s78, %s79
      %p91 = scmp.eq.s32.totalorder %s27, 1
      %p92 = por %p90, %p91
      %p94 = scmp.ne.s32.totalorder %s79, %s93
      %p95 = scmp.eq.s32.totalorder %s27, 0
      %p96 = por %p94, %p95
      %s97 = ssub.s32 %s21, %s28
      %p98 = scmp.eq.s32.totalorder %s97, 0
      %s100 = sadd.s32 %s99, 1
      %s101 = scalar_select %p98, %s99, %s100
      %p104 = pneg %p98
      %p105 = scmp.eq.s32.totalorder %s21, 1
      %p106 = por %p104, %p105
      %p107 = scmp.ne.s32.totalorder %s99, %s102
      %p108 = scmp.eq.s32.totalorder %s21, 0
      %p109 = por %p107, %p108
      %p110 = scmp.ne.s32.totalorder %s99, %s102
      %p111 = scmp.eq.s32.totalorder %s26, 1
      %p112 = por %p110, %p111
      %p113 = scmp.ne.s32.totalorder %s102, %s103
      %p114 = scmp.eq.s32.totalorder %s26, 0
      %p115 = por %p113, %p114
      %p116 = scmp.ne.s32.totalorder %s102, %s103
      %p117 = scmp.eq.s32.totalorder %s27, 1
      %p118 = por %p116, %p117
      %p120 = scmp.ne.s32.totalorder %s103, %s119
      %p121 = scmp.eq.s32.totalorder %s27, 0
      %p122 = por %p120, %p121
      %s123 = ssub.s32 %s21, %s28
      %p124 = scmp.eq.s32.totalorder %s123, 0
      %s126 = sadd.s32 %s125, 1
      %s127 = scalar_select %p124, %s125, %s126
      %p130 = pneg %p124
      %p131 = scmp.eq.s32.totalorder %s21, 1
      %p132 = por %p130, %p131
      %p133 = scmp.ne.s32.totalorder %s125, %s128
      %p134 = scmp.eq.s32.totalorder %s21, 0
      %p135 = por %p133, %p134
      %p136 = scmp.ne.s32.totalorder %s125, %s128
      %p137 = scmp.eq.s32.totalorder %s26, 1
      %p138 = por %p136, %p137
      %p139 = scmp.ne.s32.totalorder %s128, %s129
      %p140 = scmp.eq.s32.totalorder %s26, 0
      %p141 = por %p139, %p140
      %p142 = scmp.ne.s32.totalorder %s128, %s129
      %p143 = scmp.eq.s32.totalorder %s27, 1
      %p144 = por %p142, %p143
      %p146 = scmp.ne.s32.totalorder %s129, %s145
      %p147 = scmp.eq.s32.totalorder %s27, 0
      %p148 = por %p146, %p147
      %p149 = scmp.le.s32.totalorder 1, %s21
      %p150 = scmp.lt.s32.totalorder %s21, 3
      %p151 = pnand %p149, %p150
      %p152 = pneg %p151
      // Predicated region
      $region9: #{tpu_custom_call.1} parent=5 // pred_check
        _
      $region10: #{tpu_custom_call.1} parent=5 // pred_check_branch
        %154 = sbr.rel (%p151) target = $region12
      $region11: #{tpu_custom_call.1} parent=5 // pred_region
        %s155 = ssub.s32 %s21, 1
        // Predicated region
        $region13: #{tpu_custom_call.1} parent=11 // pred_check
          %p156 = pneg %p68
        $region14: #{tpu_custom_call.1} parent=11 // pred_check_branch
          %158 = sbr.rel (%p156) target = $region16
        $region15: #{tpu_custom_call.1} parent=11 // pred_region
          %160 = vsyncadd [#allocation6], 0
          %s161 = sshll.u32 %s1, 4
          %s162 = int_to_ptr.hbm [resolvable:$true] %s161
          %s163 = sshll.u32 [#allocation5], 4
          %s164 = int_to_ptr.vmem [resolvable:$true] %s163
          %169 = dma.hbm_to_vmem [thread:$0]  %s162, 2048, %s164, [#allocation6], 128, 128, 8
        $region16: #{tpu_custom_call.1} parent=11 // pred_fallthru
          _
        // Predicated region
        $region17: #{tpu_custom_call.1} parent=11 // pred_check
          %p170 = pneg %p89
        $region18: #{tpu_custom_call.1} parent=11 // pred_check_branch
          %172 = sbr.rel (%p170) target = $region20
        $region19: #{tpu_custom_call.1} parent=11 // pred_region
          %174 = vsyncadd [#allocation6], 0
          %s175 = sshll.u32 %s2, 4
          %s176 = int_to_ptr.hbm [resolvable:$true] %s175
          %s177 = sshll.u32 [#allocation7], 4
          %s178 = int_to_ptr.vmem [resolvable:$true] %s177
          %183 = dma.hbm_to_vmem [thread:$0]  %s176, 2048, %s178, [#allocation6], 128, 128, 8
        $region20: #{tpu_custom_call.1} parent=11 // pred_fallthru
          _
      $region12: #{tpu_custom_call.1} parent=5 // pred_fallthru
        _
      %p184 = scmp.lt.s32.totalorder %s21, 2
      // Predicated region
      $region21: #{tpu_custom_call.1} parent=5 // pred_check
        %p185 = pneg %p184
      $region22: #{tpu_custom_call.1} parent=5 // pred_check_branch
        %187 = sbr.rel (%p185) target = $region24
      $region23: #{tpu_custom_call.1} parent=5 // pred_region
        // Predicated region
        $region25: #{tpu_custom_call.1} parent=23 // pred_check
          %p188 = pneg %p41
        $region26: #{tpu_custom_call.1} parent=23 // pred_check_branch
          %190 = sbr.rel (%p188) target = $region28
        $region27: #{tpu_custom_call.1} parent=23 // pred_region
          %s191 = sand.u32 %s31, 1
          %s192 = scalar_lea.sflag [#allocation3], %s191
          %s193 = sand.u32 %s31, 1
          %s194 = smul.addr %s193, 256
          %s195 = scalar_lea.vmem [#allocation2], %s194
          %s196 = smul.u32 32, %s21
          %198 = vsyncadd %s192, 0
          %s199 = smul.addr %s196, 8
          %s200 = scalar_lea.hbm %s0, %s199
          %s201 = sshll.u32 %s200, 4
          %s202 = int_to_ptr.hbm [resolvable:$true] %s201
          %s203 = sshll.u32 %s195, 4
          %s204 = int_to_ptr.vmem [resolvable:$true] %s203
          %209 = dma.hbm_to_vmem [thread:$0]  %s202, 4096, %s204, %s192, 128, 128, 8
        $region28: #{tpu_custom_call.1} parent=23 // pred_fallthru
          _
      $region24: #{tpu_custom_call.1} parent=5 // pred_fallthru
        _
      %p210 = scmp.le.s32.totalorder 1, %s21
      %p211 = scmp.lt.s32.totalorder %s21, 3
      %p212 = pnand %p210, %p211
      %p213 = pneg %p212
      // Predicated region
      $region29: #{tpu_custom_call.1} parent=5 // pred_check
        _
      $region30: #{tpu_custom_call.1} parent=5 // pred_check_branch
        %215 = sbr.rel (%p212) target = $region32
      $region31: #{tpu_custom_call.1} parent=5 // pred_region
        %s216 = ssub.s32 %s21, 1
        %s217 = sand.u32 %s34, 1
        %s218 = scalar_lea.sflag [#allocation3], %s217
        %s219 = sand.u32 %s34, 1
        %s220 = smul.addr %s219, 256
        %s221 = scalar_lea.vmem [#allocation2], %s220
        // Predicated region
        $region33: #{tpu_custom_call.1} parent=31 // pred_check
          %p222 = pneg %p47
        $region34: #{tpu_custom_call.1} parent=31 // pred_check_branch
          %224 = sbr.rel (%p222) target = $region36
        $region35: #{tpu_custom_call.1} parent=31 // pred_region
          %226 = dma.done %s218, 4096
        $region36: #{tpu_custom_call.1} parent=31 // pred_fallthru
          _
        // Predicated region
        $region37: #{tpu_custom_call.1} parent=31 // pred_check
          %p227 = pneg %p68
        $region38: #{tpu_custom_call.1} parent=31 // pred_check_branch
          %229 = sbr.rel (%p227) target = $region40
        $region39: #{tpu_custom_call.1} parent=31 // pred_region
          %231 = dma.done [#allocation6], 2048
        $region40: #{tpu_custom_call.1} parent=31 // pred_fallthru
          _
        // Predicated region
        $region41: #{tpu_custom_call.1} parent=31 // pred_check
          %p232 = pneg %p89
        $region42: #{tpu_custom_call.1} parent=31 // pred_check_branch
          %234 = sbr.rel (%p232) target = $region44
        $region43: #{tpu_custom_call.1} parent=31 // pred_region
          %236 = dma.done [#allocation6], 2048
        $region44: #{tpu_custom_call.1} parent=31 // pred_fallthru
          _
        %s237 = sand.u32 %s34, 1
        %s238 = scalar_lea.sflag [#allocation3], %s237
        %s239 = sand.u32 %s34, 1
        %s240 = smul.addr %s239, 256
        %s241 = scalar_lea.vmem [#allocation2], %s240
        %p242 = pneg %p47
        %p243 = pneg %p44
        %p244 = pneg %p68
        %p245 = pneg %p65
        %p246 = pneg %p89
        %p247 = pneg %p86
        %p248 = pneg %p115
        %p249 = pneg %p112
        %s250 = sand.u32 %s102, 1
        %s251 = scalar_lea.sflag [#allocation4], %s250
        %s252 = sand.u32 %s102, 1
        %s253 = smul.addr %s252, 256
        %s254 = scalar_lea.vmem [#allocation8], %s253
        %p255 = pneg %p141
        %p256 = pneg %p138
        %s257 = sand.u32 %s128, 1
        %s258 = scalar_lea.sflag [#allocation10], %s257
        %s259 = sand.u32 %s128, 1
        %s260 = smul.addr %s259, 256
        %s261 = scalar_lea.vmem [#allocation9], %s260
        %s262 = smul.u32 32, %s26
        %s263 = smul.u32 32, %s26
        %s264 = smul.u32 32, %s26
        %v265 = vld [vmem:[%s221] sm:$0xff]
        %v266 = vld [vmem:[%s221 + $0x8] sm:$0xff]
        %v267 = vld [vmem:[%s221 + $0x10] sm:$0xff]
        %v268 = vld [vmem:[%s221 + $0x18] sm:$0xff]
        %v269 = vld [vmem:[%s221 + $0x20] sm:$0xff]
        %v270 = vld [vmem:[%s221 + $0x28] sm:$0xff]
        %v271 = vld [vmem:[%s221 + $0x30] sm:$0xff]
        %v272 = vld [vmem:[%s221 + $0x38] sm:$0xff]
        %v273 = vld [vmem:[%s221 + $0x40] sm:$0xff]
        %v274 = vld [vmem:[%s221 + $0x48] sm:$0xff]
        %v275 = vld [vmem:[%s221 + $0x50] sm:$0xff]
        %v276 = vld [vmem:[%s221 + $0x58] sm:$0xff]
        %v277 = vld [vmem:[%s221 + $0x60] sm:$0xff]
        %v278 = vld [vmem:[%s221 + $0x68] sm:$0xff]
        %v279 = vld [vmem:[%s221 + $0x70] sm:$0xff]
        %v280 = vld [vmem:[%s221 + $0x78] sm:$0xff]
        %v281 = vld [vmem:[%s221 + $0x80] sm:$0xff]
        %v282 = vld [vmem:[%s221 + $0x88] sm:$0xff]
        %v283 = vld [vmem:[%s221 + $0x90] sm:$0xff]
        %v284 = vld [vmem:[%s221 + $0x98] sm:$0xff]
        %v285 = vld [vmem:[%s221 + $0xa0] sm:$0xff]
        %v286 = vld [vmem:[%s221 + $0xa8] sm:$0xff]
        %v287 = vld [vmem:[%s221 + $0xb0] sm:$0xff]
        %v288 = vld [vmem:[%s221 + $0xb8] sm:$0xff]
        %v289 = vld [vmem:[%s221 + $0xc0] sm:$0xff]
        %v290 = vld [vmem:[%s221 + $0xc8] sm:$0xff]
        %v291 = vld [vmem:[%s221 + $0xd0] sm:$0xff]
        %v292 = vld [vmem:[%s221 + $0xd8] sm:$0xff]
        %v293 = vld [vmem:[%s221 + $0xe0] sm:$0xff]
        %v294 = vld [vmem:[%s221 + $0xe8] sm:$0xff]
        %v295 = vld [vmem:[%s221 + $0xf0] sm:$0xff]
        %v296 = vld [vmem:[%s221 + $0xf8] sm:$0xff]
        %v297 = vpack.c.bf16 %v266, %v265
        %v298 = vpack.c.bf16 %v268, %v267
        %v299 = vpack.c.bf16 %v270, %v269
        %v300 = vpack.c.bf16 %v272, %v271
        %v301 = vpack.c.bf16 %v274, %v273
        %v302 = vpack.c.bf16 %v276, %v275
        %v303 = vpack.c.bf16 %v278, %v277
        %v304 = vpack.c.bf16 %v280, %v279
        %v305 = vpack.c.bf16 %v282, %v281
        %v306 = vpack.c.bf16 %v284, %v283
        %v307 = vpack.c.bf16 %v286, %v285
        %v308 = vpack.c.bf16 %v288, %v287
        %v309 = vpack.c.bf16 %v290, %v289
        %v310 = vpack.c.bf16 %v292, %v291
        %v311 = vpack.c.bf16 %v294, %v293
        %v312 = vpack.c.bf16 %v296, %v295
        %v313 = vld [vmem:[#allocation5] sm:$0xff]
        %v314 = vld [vmem:[#allocation5 + $0x8] sm:$0xff]
        %v315 = vld [vmem:[#allocation5 + $0x10] sm:$0xff]
        %v316 = vld [vmem:[#allocation5 + $0x18] sm:$0xff]
        %v317 = vld [vmem:[#allocation5 + $0x20] sm:$0xff]
        %v318 = vld [vmem:[#allocation5 + $0x28] sm:$0xff]
        %v319 = vld [vmem:[#allocation5 + $0x30] sm:$0xff]
        %v320 = vld [vmem:[#allocation5 + $0x38] sm:$0xff]
        %v321 = vld [vmem:[#allocation5 + $0x40] sm:$0xff]
        %v322 = vld [vmem:[#allocation5 + $0x48] sm:$0xff]
        %v323 = vld [vmem:[#allocation5 + $0x50] sm:$0xff]
        %v324 = vld [vmem:[#allocation5 + $0x58] sm:$0xff]
        %v325 = vld [vmem:[#allocation5 + $0x60] sm:$0xff]
        %v326 = vld [vmem:[#allocation5 + $0x68] sm:$0xff]
        %v327 = vld [vmem:[#allocation5 + $0x70] sm:$0xff]
        %v328 = vld [vmem:[#allocation5 + $0x78] sm:$0xff]
        %v329 = vpack.c.bf16 %v314, %v313
        %v330 = vpack.c.bf16 %v316, %v315
        %v331 = vpack.c.bf16 %v318, %v317
        %v332 = vpack.c.bf16 %v320, %v319
        %v333 = vpack.c.bf16 %v322, %v321
        %v334 = vpack.c.bf16 %v324, %v323
        %v335 = vpack.c.bf16 %v326, %v325
        %v336 = vpack.c.bf16 %v328, %v327
        %337 = vmatpush.bf16.msra.mxu0 %v336
        %338 = vmatpush.bf16.msra.mxu0 %v335
        %339 = vmatpush.bf16.msra.mxu0 %v334
        %340 = vmatpush.bf16.msra.mxu0 %v333
        %341 = vmatpush.bf16.msra.mxu0 %v332
        %342 = vmatpush.bf16.msra.mxu0 %v331
        %343 = vmatpush.bf16.msra.mxu0 %v330
        %344 = vmatpush.bf16.msra.mxu0 %v329
        %345 = vmatmul.bf16.gmra.mxu0 %v297
        %v346 = vpop.f32.mrf.mxu0
        %v347 = vadd.f32 0.0, %v346
        %v348 = vpop.f32.mrf.mxu0
        %v349 = vadd.f32 0.0, %v348
        %350 = vmatmul.bf16.gmra.mxu0 %v298
        %v351 = vpop.f32.mrf.mxu0
        %v352 = vadd.f32 0.0, %v351
        %v353 = vpop.f32.mrf.mxu0
        %v354 = vadd.f32 0.0, %v353
        %355 = vmatmul.bf16.gmra.mxu0 %v299
        %v356 = vpop.f32.mrf.mxu0
        %v357 = vadd.f32 0.0, %v356
        %v358 = vpop.f32.mrf.mxu0
        %v359 = vadd.f32 0.0, %v358
        %360 = vmatmul.bf16.gmra.mxu0 %v300
        %v361 = vpop.f32.mrf.mxu0
        %v362 = vadd.f32 0.0, %v361
        %v363 = vpop.f32.mrf.mxu0
        %v364 = vadd.f32 0.0, %v363
        %365 = vmatmul.bf16.gmra.mxu0 %v301
        %v366 = vpop.f32.mrf.mxu0
        %v367 = vadd.f32 0.0, %v366
        %v368 = vpop.f32.mrf.mxu0
        %v369 = vadd.f32 0.0, %v368
        %370 = vmatmul.bf16.gmra.mxu0 %v302
        %v371 = vpop.f32.mrf.mxu0
        %v372 = vadd.f32 0.0, %v371
        %v373 = vpop.f32.mrf.mxu0
        %v374 = vadd.f32 0.0, %v373
        %375 = vmatmul.bf16.gmra.mxu0 %v303
        %v376 = vpop.f32.mrf.mxu0
        %v377 = vadd.f32 0.0, %v376
        %v378 = vpop.f32.mrf.mxu0
        %v379 = vadd.f32 0.0, %v378
        %380 = vmatmul.bf16.gmra.mxu0 %v304
        %v381 = vpop.f32.mrf.mxu0
        %v382 = vadd.f32 0.0, %v381
        %v383 = vpop.f32.mrf.mxu0
        %v384 = vadd.f32 0.0, %v383
        %385 = vmatmul.bf16.gmra.mxu0 %v305
        %v386 = vpop.f32.mrf.mxu0
        %v387 = vadd.f32 0.0, %v386
        %v388 = vpop.f32.mrf.mxu0
        %v389 = vadd.f32 0.0, %v388
        %390 = vmatmul.bf16.gmra.mxu0 %v306
        %v391 = vpop.f32.mrf.mxu0
        %v392 = vadd.f32 0.0, %v391
        %v393 = vpop.f32.mrf.mxu0
        %v394 = vadd.f32 0.0, %v393
        %395 = vmatmul.bf16.gmra.mxu0 %v307
        %v396 = vpop.f32.mrf.mxu0
        %v397 = vadd.f32 0.0, %v396
        %v398 = vpop.f32.mrf.mxu0
        %v399 = vadd.f32 0.0, %v398
        %400 = vmatmul.bf16.gmra.mxu0 %v308
        %v401 = vpop.f32.mrf.mxu0
        %v402 = vadd.f32 0.0, %v401
        %v403 = vpop.f32.mrf.mxu0
        %v404 = vadd.f32 0.0, %v403
        %405 = vmatmul.bf16.gmra.mxu0 %v309
        %v406 = vpop.f32.mrf.mxu0
        %v407 = vadd.f32 0.0, %v406
        %v408 = vpop.f32.mrf.mxu0
        %v409 = vadd.f32 0.0, %v408
        %410 = vmatmul.bf16.gmra.mxu0 %v310
        %v411 = vpop.f32.mrf.mxu0
        %v412 = vadd.f32 0.0, %v411
        %v413 = vpop.f32.mrf.mxu0
        %v414 = vadd.f32 0.0, %v413
        %415 = vmatmul.bf16.gmra.mxu0 %v311
        %v416 = vpop.f32.mrf.mxu0
        %v417 = vadd.f32 0.0, %v416
        %v418 = vpop.f32.mrf.mxu0
        %v419 = vadd.f32 0.0, %v418
        %420 = vmatmul.bf16.gmra.mxu0 %v312
        %v421 = vpop.f32.mrf.mxu0
        %v422 = vadd.f32 0.0, %v421
        %v423 = vpop.f32.mrf.mxu0
        %v424 = vadd.f32 0.0, %v423
        %425 = vdwg.mxu0
        %426 = vst [vmem:[%s254] sm:$0xff] %v347
        %427 = vst [vmem:[%s254 + $0x8] sm:$0xff] %v349
        %428 = vst [vmem:[%s254 + $0x10] sm:$0xff] %v352
        %429 = vst [vmem:[%s254 + $0x18] sm:$0xff] %v354
        %430 = vst [vmem:[%s254 + $0x20] sm:$0xff] %v357
        %431 = vst [vmem:[%s254 + $0x28] sm:$0xff] %v359
        %432 = vst [vmem:[%s254 + $0x30] sm:$0xff] %v362
        %433 = vst [vmem:[%s254 + $0x38] sm:$0xff] %v364
        %434 = vst [vmem:[%s254 + $0x40] sm:$0xff] %v367
        %435 = vst [vmem:[%s254 + $0x48] sm:$0xff] %v369
        %436 = vst [vmem:[%s254 + $0x50] sm:$0xff] %v372
        %437 = vst [vmem:[%s254 + $0x58] sm:$0xff] %v374
        %438 = vst [vmem:[%s254 + $0x60] sm:$0xff] %v377
        %439 = vst [vmem:[%s254 + $0x68] sm:$0xff] %v379
        %440 = vst [vmem:[%s254 + $0x70] sm:$0xff] %v382
        %441 = vst [vmem:[%s254 + $0x78] sm:$0xff] %v384
        %442 = vst [vmem:[%s254 + $0x80] sm:$0xff] %v387
        %443 = vst [vmem:[%s254 + $0x88] sm:$0xff] %v389
        %444 = vst [vmem:[%s254 + $0x90] sm:$0xff] %v392
        %445 = vst [vmem:[%s254 + $0x98] sm:$0xff] %v394
        %446 = vst [vmem:[%s254 + $0xa0] sm:$0xff] %v397
        %447 = vst [vmem:[%s254 + $0xa8] sm:$0xff] %v399
        %448 = vst [vmem:[%s254 + $0xb0] sm:$0xff] %v402
        %449 = vst [vmem:[%s254 + $0xb8] sm:$0xff] %v404
        %450 = vst [vmem:[%s254 + $0xc0] sm:$0xff] %v407
        %451 = vst [vmem:[%s254 + $0xc8] sm:$0xff] %v409
        %452 = vst [vmem:[%s254 + $0xd0] sm:$0xff] %v412
        %453 = vst [vmem:[%s254 + $0xd8] sm:$0xff] %v414
        %454 = vst [vmem:[%s254 + $0xe0] sm:$0xff] %v417
        %455 = vst [vmem:[%s254 + $0xe8] sm:$0xff] %v419
        %456 = vst [vmem:[%s254 + $0xf0] sm:$0xff] %v422
        %457 = vst [vmem:[%s254 + $0xf8] sm:$0xff] %v424
        %v458 = vpack.c.bf16 %v349, %v347
        %v459 = vpack.c.bf16 %v354, %v352
        %v460 = vpack.c.bf16 %v359, %v357
        %v461 = vpack.c.bf16 %v364, %v362
        %v462 = vpack.c.bf16 %v369, %v367
        %v463 = vpack.c.bf16 %v374, %v372
        %v464 = vpack.c.bf16 %v379, %v377
        %v465 = vpack.c.bf16 %v384, %v382
        %v466 = vpack.c.bf16 %v389, %v387
        %v467 = vpack.c.bf16 %v394, %v392
        %v468 = vpack.c.bf16 %v399, %v397
        %v469 = vpack.c.bf16 %v404, %v402
        %v470 = vpack.c.bf16 %v409, %v407
        %v471 = vpack.c.bf16 %v414, %v412
        %v472 = vpack.c.bf16 %v419, %v417
        %v473 = vpack.c.bf16 %v424, %v422
        %v474 = vld [vmem:[#allocation7] sm:$0xff]
        %v475 = vld [vmem:[#allocation7 + $0x8] sm:$0xff]
        %v476 = vld [vmem:[#allocation7 + $0x10] sm:$0xff]
        %v477 = vld [vmem:[#allocation7 + $0x18] sm:$0xff]
        %v478 = vld [vmem:[#allocation7 + $0x20] sm:$0xff]
        %v479 = vld [vmem:[#allocation7 + $0x28] sm:$0xff]
        %v480 = vld [vmem:[#allocation7 + $0x30] sm:$0xff]
        %v481 = vld [vmem:[#allocation7 + $0x38] sm:$0xff]
        %v482 = vld [vmem:[#allocation7 + $0x40] sm:$0xff]
        %v483 = vld [vmem:[#allocation7 + $0x48] sm:$0xff]
        %v484 = vld [vmem:[#allocation7 + $0x50] sm:$0xff]
        %v485 = vld [vmem:[#allocation7 + $0x58] sm:$0xff]
        %v486 = vld [vmem:[#allocation7 + $0x60] sm:$0xff]
        %v487 = vld [vmem:[#allocation7 + $0x68] sm:$0xff]
        %v488 = vld [vmem:[#allocation7 + $0x70] sm:$0xff]
        %v489 = vld [vmem:[#allocation7 + $0x78] sm:$0xff]
        %v490 = vpack.c.bf16 %v475, %v474
        %v491 = vpack.c.bf16 %v477, %v476
        %v492 = vpack.c.bf16 %v479, %v478
        %v493 = vpack.c.bf16 %v481, %v480
        %v494 = vpack.c.bf16 %v483, %v482
        %v495 = vpack.c.bf16 %v485, %v484
        %v496 = vpack.c.bf16 %v487, %v486
        %v497 = vpack.c.bf16 %v489, %v488
        %498 = vmatpush.bf16.msra.mxu0 %v497
        %499 = vmatpush.bf16.msra.mxu0 %v496
        %500 = vmatpush.bf16.msra.mxu0 %v495
        %501 = vmatpush.bf16.msra.mxu0 %v494
        %502 = vmatpush.bf16.msra.mxu0 %v493
        %503 = vmatpush.bf16.msra.mxu0 %v492
        %504 = vmatpush.bf16.msra.mxu0 %v491
        %505 = vmatpush.bf16.msra.mxu0 %v490
        %506 = vmatmul.bf16.gmra.mxu0 %v458
        %v507 = vpop.f32.mrf.mxu0
        %v508 = vadd.f32 0.0, %v507
        %v509 = vpop.f32.mrf.mxu0
        %v510 = vadd.f32 0.0, %v509
        %511 = vmatmul.bf16.gmra.mxu0 %v459
        %v512 = vpop.f32.mrf.mxu0
        %v513 = vadd.f32 0.0, %v512
        %v514 = vpop.f32.mrf.mxu0
        %v515 = vadd.f32 0.0, %v514
        %516 = vmatmul.bf16.gmra.mxu0 %v460
        %v517 = vpop.f32.mrf.mxu0
        %v518 = vadd.f32 0.0, %v517
        %v519 = vpop.f32.mrf.mxu0
        %v520 = vadd.f32 0.0, %v519
        %521 = vmatmul.bf16.gmra.mxu0 %v461
        %v522 = vpop.f32.mrf.mxu0
        %v523 = vadd.f32 0.0, %v522
        %v524 = vpop.f32.mrf.mxu0
        %v525 = vadd.f32 0.0, %v524
        %526 = vmatmul.bf16.gmra.mxu0 %v462
        %v527 = vpop.f32.mrf.mxu0
        %v528 = vadd.f32 0.0, %v527
        %v529 = vpop.f32.mrf.mxu0
        %v530 = vadd.f32 0.0, %v529
        %531 = vmatmul.bf16.gmra.mxu0 %v463
        %v532 = vpop.f32.mrf.mxu0
        %v533 = vadd.f32 0.0, %v532
        %v534 = vpop.f32.mrf.mxu0
        %v535 = vadd.f32 0.0, %v534
        %536 = vmatmul.bf16.gmra.mxu0 %v464
        %v537 = vpop.f32.mrf.mxu0
        %v538 = vadd.f32 0.0, %v537
        %v539 = vpop.f32.mrf.mxu0
        %v540 = vadd.f32 0.0, %v539
        %541 = vmatmul.bf16.gmra.mxu0 %v465
        %v542 = vpop.f32.mrf.mxu0
        %v543 = vadd.f32 0.0, %v542
        %v544 = vpop.f32.mrf.mxu0
        %v545 = vadd.f32 0.0, %v544
        %546 = vmatmul.bf16.gmra.mxu0 %v466
        %v547 = vpop.f32.mrf.mxu0
        %v548 = vadd.f32 0.0, %v547
        %v549 = vpop.f32.mrf.mxu0
        %v550 = vadd.f32 0.0, %v549
        %551 = vmatmul.bf16.gmra.mxu0 %v467
        %v552 = vpop.f32.mrf.mxu0
        %v553 = vadd.f32 0.0, %v552
        %v554 = vpop.f32.mrf.mxu0
        %v555 = vadd.f32 0.0, %v554
        %556 = vmatmul.bf16.gmra.mxu0 %v468
        %v557 = vpop.f32.mrf.mxu0
        %v558 = vadd.f32 0.0, %v557
        %v559 = vpop.f32.mrf.mxu0
        %v560 = vadd.f32 0.0, %v559
        %561 = vmatmul.bf16.gmra.mxu0 %v469
        %v562 = vpop.f32.mrf.mxu0
        %v563 = vadd.f32 0.0, %v562
        %v564 = vpop.f32.mrf.mxu0
        %v565 = vadd.f32 0.0, %v564
        %566 = vmatmul.bf16.gmra.mxu0 %v470
        %v567 = vpop.f32.mrf.mxu0
        %v568 = vadd.f32 0.0, %v567
        %v569 = vpop.f32.mrf.mxu0
        %v570 = vadd.f32 0.0, %v569
        %571 = vmatmul.bf16.gmra.mxu0 %v471
        %v572 = vpop.f32.mrf.mxu0
        %v573 = vadd.f32 0.0, %v572
        %v574 = vpop.f32.mrf.mxu0
        %v575 = vadd.f32 0.0, %v574
        %576 = vmatmul.bf16.gmra.mxu0 %v472
        %v577 = vpop.f32.mrf.mxu0
        %v578 = vadd.f32 0.0, %v577
        %v579 = vpop.f32.mrf.mxu0
        %v580 = vadd.f32 0.0, %v579
        %581 = vmatmul.bf16.gmra.mxu0 %v473
        %v582 = vpop.f32.mrf.mxu0
        %v583 = vadd.f32 0.0, %v582
        %v584 = vpop.f32.mrf.mxu0
        %v585 = vadd.f32 0.0, %v584
        %586 = vdwg.mxu0
        %587 = vst [vmem:[%s261] sm:$0xff] %v508
        %588 = vst [vmem:[%s261 + $0x8] sm:$0xff] %v510
        %589 = vst [vmem:[%s261 + $0x10] sm:$0xff] %v513
        %590 = vst [vmem:[%s261 + $0x18] sm:$0xff] %v515
        %591 = vst [vmem:[%s261 + $0x20] sm:$0xff] %v518
        %592 = vst [vmem:[%s261 + $0x28] sm:$0xff] %v520
        %593 = vst [vmem:[%s261 + $0x30] sm:$0xff] %v523
        %594 = vst [vmem:[%s261 + $0x38] sm:$0xff] %v525
        %595 = vst [vmem:[%s261 + $0x40] sm:$0xff] %v528
        %596 = vst [vmem:[%s261 + $0x48] sm:$0xff] %v530
        %597 = vst [vmem:[%s261 + $0x50] sm:$0xff] %v533
        %598 = vst [vmem:[%s261 + $0x58] sm:$0xff] %v535
        %599 = vst [vmem:[%s261 + $0x60] sm:$0xff] %v538
        %600 = vst [vmem:[%s261 + $0x68] sm:$0xff] %v540
        %601 = vst [vmem:[%s261 + $0x70] sm:$0xff] %v543
        %602 = vst [vmem:[%s261 + $0x78] sm:$0xff] %v545
        %603 = vst [vmem:[%s261 + $0x80] sm:$0xff] %v548
        %604 = vst [vmem:[%s261 + $0x88] sm:$0xff] %v550
        %605 = vst [vmem:[%s261 + $0x90] sm:$0xff] %v553
        %606 = vst [vmem:[%s261 + $0x98] sm:$0xff] %v555
        %607 = vst [vmem:[%s261 + $0xa0] sm:$0xff] %v558
        %608 = vst [vmem:[%s261 + $0xa8] sm:$0xff] %v560
        %609 = vst [vmem:[%s261 + $0xb0] sm:$0xff] %v563
        %610 = vst [vmem:[%s261 + $0xb8] sm:$0xff] %v565
        %611 = vst [vmem:[%s261 + $0xc0] sm:$0xff] %v568
        %612 = vst [vmem:[%s261 + $0xc8] sm:$0xff] %v570
        %613 = vst [vmem:[%s261 + $0xd0] sm:$0xff] %v573
        %614 = vst [vmem:[%s261 + $0xd8] sm:$0xff] %v575
        %615 = vst [vmem:[%s261 + $0xe0] sm:$0xff] %v578
        %616 = vst [vmem:[%s261 + $0xe8] sm:$0xff] %v580
        %617 = vst [vmem:[%s261 + $0xf0] sm:$0xff] %v583
        %618 = vst [vmem:[%s261 + $0xf8] sm:$0xff] %v585
        %s619 = sand.u32 %s102, 1
        %s620 = scalar_lea.sflag [#allocation4], %s619
        %s621 = sand.u32 %s102, 1
        %s622 = smul.addr %s621, 256
        %s623 = scalar_lea.vmem [#allocation8], %s622
        %s624 = sand.u32 %s128, 1
        %s625 = scalar_lea.sflag [#allocation10], %s624
        %s626 = sand.u32 %s128, 1
        %s627 = smul.addr %s626, 256
        %s628 = scalar_lea.vmem [#allocation9], %s627
        // Predicated region
        $region45: #{tpu_custom_call.1} parent=31 // pred_check
          %p629 = pneg %p112
        $region46: #{tpu_custom_call.1} parent=31 // pred_check_branch
          %631 = sbr.rel (%p629) target = $region48
        $region47: #{tpu_custom_call.1} parent=31 // pred_region
          %s632 = smul.u32 32, %s26
          %634 = vsyncadd %s620, 0
          %s635 = smul.addr %s632, 8
          %s636 = scalar_lea.hbm %s3, %s635
          %s637 = sshll.u32 %s623, 4
          %s638 = int_to_ptr.vmem [resolvable:$true] %s637
          %s639 = sshll.u32 %s636, 4
          %s640 = int_to_ptr.hbm [resolvable:$true] %s639
          %645 = dma.vmem_to_hbm [thread:$0]  %s638, 4096, %s640, %s620, 128, 128, 8
        $region48: #{tpu_custom_call.1} parent=31 // pred_fallthru
          _
        // Predicated region
        $region49: #{tpu_custom_call.1} parent=31 // pred_check
          %p646 = pneg %p138
        $region50: #{tpu_custom_call.1} parent=31 // pred_check_branch
          %648 = sbr.rel (%p646) target = $region52
        $region51: #{tpu_custom_call.1} parent=31 // pred_region
          %s649 = smul.u32 32, %s26
          %651 = vsyncadd %s625, 0
          %s652 = smul.addr %s649, 8
          %s653 = scalar_lea.hbm %s4, %s652
          %s654 = sshll.u32 %s628, 4
          %s655 = int_to_ptr.vmem [resolvable:$true] %s654
          %s656 = sshll.u32 %s653, 4
          %s657 = int_to_ptr.hbm [resolvable:$true] %s656
          %662 = dma.vmem_to_hbm [thread:$0]  %s655, 4096, %s657, %s625, 128, 128, 8
        $region52: #{tpu_custom_call.1} parent=31 // pred_fallthru
          _
      $region32: #{tpu_custom_call.1} parent=5 // pred_fallthru
        _
      %p663 = scmp.le.s32.totalorder 2, %s21
      // Predicated region
      $region53: #{tpu_custom_call.1} parent=5 // pred_check
        %p664 = pneg %p663
      $region54: #{tpu_custom_call.1} parent=5 // pred_check_branch
        %666 = sbr.rel (%p664) target = $region56
      $region55: #{tpu_custom_call.1} parent=5 // pred_region
        %s667 = ssub.s32 %s21, 2
        // Predicated region
        $region57: #{tpu_custom_call.1} parent=55 // pred_check
          %p668 = pneg %p118
        $region58: #{tpu_custom_call.1} parent=55 // pred_check_branch
          %670 = sbr.rel (%p668) target = $region60
        $region59: #{tpu_custom_call.1} parent=55 // pred_region
          %s671 = sand.u32 %s103, 1
          %s672 = scalar_lea.sflag [#allocation4], %s671
          %s673 = sand.u32 %s103, 1
          %s674 = smul.addr %s673, 256
          %s675 = scalar_lea.vmem [#allocation8], %s674
          %677 = dma.done %s672, 4096
        $region60: #{tpu_custom_call.1} parent=55 // pred_fallthru
          _
        // Predicated region
        $region61: #{tpu_custom_call.1} parent=55 // pred_check
          %p678 = pneg %p144
        $region62: #{tpu_custom_call.1} parent=55 // pred_check_branch
          %680 = sbr.rel (%p678) target = $region64
        $region63: #{tpu_custom_call.1} parent=55 // pred_region
          %s681 = sand.u32 %s129, 1
          %s682 = scalar_lea.sflag [#allocation10], %s681
          %s683 = sand.u32 %s129, 1
          %s684 = smul.addr %s683, 256
          %s685 = scalar_lea.vmem [#allocation9], %s684
          %687 = dma.done %s682, 4096
        $region64: #{tpu_custom_call.1} parent=55 // pred_fallthru
          _
      $region56: #{tpu_custom_call.1} parent=5 // pred_fallthru
        _
    $region6: #{tpu_custom_call.1} parent=1 // loop_footer
      %s25 = sadd.s32 1, %s21
    $region7: #{tpu_custom_call.1} parent=1 // loop_footer_branch
      %20 = sbr.rel target = $region3
    $region8: #{tpu_custom_call.1} parent=1 // loop_exit
      _
    %688 = vsyncpa [#allocation3], 1
    %s689 = scalar_lea.sflag [#allocation3], 1
    %690 = vsyncpa %s689, 1
    %691 = vsyncpa [#allocation6], 1
    %692 = vsyncpa [#allocation4], 1
    %s693 = scalar_lea.sflag [#allocation4], 1
    %694 = vsyncpa %s693, 1
    %695 = vsyncpa [#allocation10], 1
    %s696 = scalar_lea.sflag [#allocation10], 1
    %697 = vsyncpa %s696, 1

</llo_original>
